<compile_context>
chip_gen: v7x
topology: tpu7x:2x2x1
jax: 0.10.0
libtpu: 0.0.40
codegen_flags: <defaults>
</compile_context>

<pallas_src>
import functools

import jax
import jax.numpy as jnp
from jax.experimental import pallas as pl
from jax.experimental.pallas import tpu as pltpu


def _crop_kernel(ih_ref, iw_ref, x_ref, o_ref, *, crop_h, crop_w, num_crops, pos_enc):
    """ih/iw: SMEM (B*N,) int32; x_ref: VMEM (1,C,H,W); o_ref: VMEM (1,N,C_out*CH,CW)."""
    b = pl.program_id(0)
    _, C, H, W = x_ref.shape

    in_dtype = x_ref.dtype
    compute_dtype = in_dtype if jnp.issubdtype(in_dtype, jnp.floating) else jnp.float32

    # Hoisted iota tables (built once per image, reused for all N crops).
    col_ids = jax.lax.broadcasted_iota(jnp.int32, (W, crop_w), 0)   # source column w
    tgt_ids = jax.lax.broadcasted_iota(jnp.int32, (W, crop_w), 1)   # crop column j
    if pos_enc:
        row_pos = jax.lax.broadcasted_iota(jnp.int32, (crop_h, crop_w), 0).astype(jnp.float32)
        col_pos = jax.lax.broadcasted_iota(jnp.int32, (crop_h, crop_w), 1).astype(jnp.float32)

    # Static loop over crops: all output indices below are compile-time constants,
    # only h0/w0 (SMEM scalars) are dynamic.
    for n in range(num_crops):
        i = b * num_crops + n
        # Clamp for memory / selection safety on BOTH axes (clamped-crop semantics;
        # indices sampled by forward() are always in range).
        h0 = jnp.clip(ih_ref[i], 0, H - crop_h)
        w0 = jnp.clip(iw_ref[i], 0, W - crop_w)

        # Row gather: dynamic slice on the sublane (second-to-last) dim.
        rows = x_ref[0, :, pl.ds(h0, crop_h), :]                     # (C, CH, W)

        # Column gather: exact one-hot selection, fused across channels so one
        # small MXU matmul carries C * crop_h useful rows.
        sel_w = (col_ids == tgt_ids + w0).astype(compute_dtype)      # (W, CW)
        flat = rows.astype(compute_dtype).reshape(C * crop_h, W)     # (C*CH, W)
        crop = jnp.dot(flat, sel_w, preferred_element_type=jnp.float32)  # (C*CH, CW)
        o_ref[0, n, : C * crop_h, :] = crop.astype(o_ref.dtype)

        if pos_enc:
            # Positional-encoding channels computed analytically from (h0, w0):
            # pos_y[i, j] = (h0 + i) / H, pos_x[i, j] = (w0 + j) / W.
            h0f = h0.astype(jnp.float32)
            w0f = w0.astype(jnp.float32)
            pos_y = (h0f + row_pos) / jnp.float32(H)
            pos_x = (w0f + col_pos) / jnp.float32(W)
            o_ref[0, n, C * crop_h:(C + 1) * crop_h, :] = pos_y.astype(o_ref.dtype)
            o_ref[0, n, (C + 1) * crop_h:(C + 2) * crop_h, :] = pos_x.astype(o_ref.dtype)


def crop_from_indices_pallas(images, crop_inds, crop_h, crop_w, *, pos_enc=False):
    """images: (B, C, H, W); crop_inds: (B, N, 2) int32 -> crops (B*N, C_out, CH, CW).

    Equivalent to (optionally pos-enc augmented) crop_image_from_indices followed
    by join_dimensions(out, 0, 1).  pos_enc channels are generated in-kernel.
    """
    B, C, H, W = images.shape
    N = crop_inds.shape[1]
    C_out = C + 2 if pos_enc else C

    # 1-D scalar-prefetch tables (2-D SMEM would pad to [ceil(R/8)*8, 128] words).
    inds_h = crop_inds[..., 0].reshape(B * N).astype(jnp.int32)
    inds_w = crop_inds[..., 1].reshape(B * N).astype(jnp.int32)

    kernel = functools.partial(
        _crop_kernel, crop_h=crop_h, crop_w=crop_w, num_crops=N, pos_enc=pos_enc)

    itemsize = images.dtype.itemsize
    in_block_bytes = C * H * W * itemsize
    out_block_bytes = N * C_out * crop_h * crop_w * itemsize
    # Double-buffered input + output blocks plus slack; 32 MiB floor is safe on
    # every generation (v5e/v6e physical 128 MiB, v7x physical 64 MiB), cap at
    # 64 MiB for v7x.  TODO(synk): tile the channel axis for feature maps whose
    # double-buffered blocks exceed ~48 MiB.
    vmem_est = 2 * (in_block_bytes + out_block_bytes) + (1 << 20)
    vmem_limit = int(min(max(vmem_est, 32 << 20), 64 << 20))

    cost = pl.CostEstimate(
        flops=2 * B * N * C * crop_h * W * crop_w,
        transcendentals=0,
        bytes_accessed=B * C * H * W * itemsize
        + B * N * C_out * crop_h * crop_w * itemsize,
    )

    out = pl.pallas_call(
        kernel,
        out_shape=jax.ShapeDtypeStruct((B, N, C_out * crop_h, crop_w), images.dtype),
        grid_spec=pltpu.PrefetchScalarGridSpec(
            num_scalar_prefetch=2,
            grid=(B,),
            in_specs=[
                # Whole image VMEM-resident for all N crops of this image.
                pl.BlockSpec((1, C, H, W), lambda b, ih, iw: (b, 0, 0, 0)),
            ],
            out_specs=pl.BlockSpec(
                (1, N, C_out * crop_h, crop_w), lambda b, ih, iw: (b, 0, 0, 0)),
        ),
        compiler_params=pltpu.CompilerParams(
            dimension_semantics=("parallel",),
            vmem_limit_bytes=vmem_limit),
        cost_estimate=cost,
    )(inds_h, inds_w, images)

    # Free metadata reshape: (B, N, C_out*CH, CW) -> (B*N, C_out, CH, CW).
    return out.reshape(B * N, C_out, crop_h, crop_w)


class CropRandomizerPallas:
    """JAX/Pallas port of CropRandomizer (training-mode forward == forward_in)."""

    def __init__(self, input_shape, crop_height, crop_width, num_crops=1, pos_enc=False):
        assert len(input_shape) == 3
        assert crop_height < input_shape[1]
        assert crop_width < input_shape[2]
        self.input_shape = tuple(input_shape)
        self.crop_height = crop_height
        self.crop_width = crop_width
        self.num_crops = num_crops
        self.pos_enc = pos_enc
        self.last_crop_inds = None

    def output_shape_in(self, input_shape=None):
        out_c = self.input_shape[0] + 2 if self.pos_enc else self.input_shape[0]
        return [out_c, self.crop_height, self.crop_width]

    def output_shape_out(self, input_shape=None):
        return list(input_shape)

    def forward(self, inputs, rng):
        """inputs: (B, C, H, W) -> (B * num_crops, C(+2), crop_h, crop_w)."""
        assert inputs.ndim == 4
        B, C, H, W = inputs.shape
        if self.pos_enc:
            # pos-enc channels are float; matches torch.cat dtype requirements.
            assert jnp.issubdtype(inputs.dtype, jnp.floating)

        max_h = H - self.crop_height
        max_w = W - self.crop_width
        kh, kw = jax.random.split(rng)
        # matches (max * torch.rand(...)).long(): floor of uniform in [0, max)
        inds_h = jnp.floor(
            max_h * jax.random.uniform(kh, (B, self.num_crops))).astype(jnp.int32)
        inds_w = jnp.floor(
            max_w * jax.random.uniform(kw, (B, self.num_crops))).astype(jnp.int32)
        crop_inds = jnp.stack([inds_h, inds_w], axis=-1)       # (B, N, 2)
        # NOTE: this is a traced array if forward() is jitted.
        self.last_crop_inds = crop_inds

        return crop_from_indices_pallas(
            inputs, crop_inds, self.crop_height, self.crop_width,
            pos_enc=self.pos_enc)

    def forward_out(self, inputs):
        """[B*N, ...] -> mean over the N crops -> [B, ...] (plain JAX glue)."""
        if self.num_crops <= 1:
            return inputs
        b = inputs.shape[0] // self.num_crops
        return inputs.reshape((b, self.num_crops) + inputs.shape[1:]).mean(axis=1)

    # TODO(synk): eval-mode center-crop path (forward_in when not training) is not
    # wired up; it would reuse crop_from_indices_pallas with fixed center indices.


if __name__ == "__main__":
    key = jax.random.PRNGKey(0)
    B, C, H, W = 2, 4, 16, 16
    CH, CW, N = 8, 8, 2

    kimg, krng, krng2 = jax.random.split(key, 3)
    x = jax.random.normal(kimg, (B, C, H, W), dtype=jnp.float32)

    # --- plain crop path ---
    module = CropRandomizerPallas((C, H, W), CH, CW, num_crops=N, pos_enc=False)
    out = jax.block_until_ready(module.forward(x, krng))
    assert out.shape == (B * N, C, CH, CW), out.shape

    inds = jax.device_get(module.last_crop_inds)
    ref = []
    for b in range(B):
        for n in range(N):
            h0, w0 = int(inds[b, n, 0]), int(inds[b, n, 1])
            ref.append(x[b, :, h0:h0 + CH, w0:w0 + CW])
    ref = jnp.stack(ref, axis=0)
    assert jnp.allclose(out, ref, atol=1e-6), "mismatch vs reference crop"

    # --- pos_enc path (C + 2 channels, generated in-kernel) ---
    module_pe = CropRandomizerPallas((C, H, W), CH, CW, num_crops=N, pos_enc=True)
    out_pe = jax.block_until_ready(module_pe.forward(x, krng2))
    assert out_pe.shape == (B * N, C + 2, CH, CW), out_pe.shape

    pos_y = jnp.broadcast_to((jnp.arange(H, dtype=jnp.float32) / H)[:, None], (H, W))
    pos_x = jnp.broadcast_to((jnp.arange(W, dtype=jnp.float32) / W)[None, :], (H, W))
    pe = jnp.broadcast_to(jnp.stack([pos_y, pos_x])[None], (B, 2, H, W))
    src_pe = jnp.concatenate([x, pe], axis=1)
    inds_pe = jax.device_get(module_pe.last_crop_inds)
    ref_pe = []
    for b in range(B):
        for n in range(N):
            h0, w0 = int(inds_pe[b, n, 0]), int(inds_pe[b, n, 1])
            ref_pe.append(src_pe[b, :, h0:h0 + CH, w0:w0 + CW])
    ref_pe = jnp.stack(ref_pe, axis=0)
    assert jnp.allclose(out_pe, ref_pe, atol=1e-6), "mismatch vs pos_enc reference"

    # exercise forward_out (mean over crops) for completeness
    pooled = jax.block_until_ready(module.forward_out(out))
    assert pooled.shape == (B, C, CH, CW)

    print("KERNEL_OK")
</pallas_src>

<mosaic_0001>
module attributes {stable_mosaic.version = 11 : i64} {
  func.func @_crop_kernel(%arg0: i32, %arg1: memref<4xi32, #tpu.memory_space<smem>>, %arg2: memref<4xi32, #tpu.memory_space<smem>>, %arg3: memref<1x4x16x16xf32, #tpu.memory_space<vmem>>, %arg4: memref<1x2x32x8xf32, #tpu.memory_space<vmem>>) attributes {dimension_semantics = [#tpu.dimension_semantics<parallel>], iteration_bounds = array<i64: 2>, scalar_prefetch = 2 : i64, scratch_operands = 0 : i64, tpu.core_type = #tpu.core_type<tc>, window_params = [{transform_indices = @transform_0, window_bounds = array<i64: 1, 4, 16, 16>}, {transform_indices = @transform_1, window_bounds = array<i64: 1, 2, 32, 8>}]} {
    %0 = tpu.iota {dimensions = array<i32: 0>} : vector<16x8xi32>
    %1 = tpu.iota {dimensions = array<i32: 1>} : vector<16x8xi32>
    %c2_i32 = arith.constant 2 : i32
    %2 = arith.muli %arg0, %c2_i32 : i32
    %c0_i32 = arith.constant 0 : i32
    %3 = arith.addi %2, %c0_i32 : i32
    %4 = arith.index_cast %3 : i32 to index
    %5 = memref.load %arg1[%4] : memref<4xi32, #tpu.memory_space<smem>>
    %c0_i32_0 = arith.constant 0 : i32
    %c8_i32 = arith.constant 8 : i32
    %6 = arith.maxsi %c0_i32_0, %5 : i32
    %7 = arith.minsi %c8_i32, %6 : i32
    %8 = arith.index_cast %3 : i32 to index
    %9 = memref.load %arg2[%8] : memref<4xi32, #tpu.memory_space<smem>>
    %c0_i32_1 = arith.constant 0 : i32
    %c8_i32_2 = arith.constant 8 : i32
    %10 = arith.maxsi %c0_i32_1, %9 : i32
    %11 = arith.minsi %c8_i32_2, %10 : i32
    %c0 = arith.constant 0 : index
    %c0_3 = arith.constant 0 : index
    %12 = arith.index_cast %7 : i32 to index
    %c0_4 = arith.constant 0 : index
    %13 = vector.load %arg3[%c0, %c0_3, %12, %c0_4] : memref<1x4x16x16xf32, #tpu.memory_space<vmem>>, vector<1x4x8x16xf32>
    %14 = vector.shape_cast %13 : vector<1x4x8x16xf32> to vector<4x8x16xf32>
    %15 = vector.broadcast %11 : i32 to vector<16x8xi32>
    %16 = arith.addi %1, %15 : vector<16x8xi32>
    %17 = arith.cmpi eq, %0, %16 : vector<16x8xi32>
    %18 = arith.extui %17 : vector<16x8xi1> to vector<16x8xi32>
    %19 = arith.sitofp %18 : vector<16x8xi32> to vector<16x8xf32>
    %20 = vector.shape_cast %14 : vector<4x8x16xf32> to vector<32x16xf32>
    %cst = arith.constant dense<0.000000e+00> : vector<32x8xf32>
    %21 = tpu.matmul %20, %19, %cst {dimension_numbers = #tpu.dot_dimension_numbers<[1], [0], [0], [1], [0, 0, 1, 1], [], []>} : vector<32x16xf32>, vector<16x8xf32>, vector<32x8xf32> -> vector<32x8xf32>
    %c0_5 = arith.constant 0 : index
    %c0_6 = arith.constant 0 : index
    %c0_7 = arith.constant 0 : index
    %c0_8 = arith.constant 0 : index
    %22 = vector.load %arg4[%c0_5, %c0_6, %c0_7, %c0_8] : memref<1x2x32x8xf32, #tpu.memory_space<vmem>>, vector<1x1x32x8xf32>
    %23 = vector.shape_cast %22 : vector<1x1x32x8xf32> to vector<32x8xf32>
    %24 = vector.shape_cast %21 : vector<32x8xf32> to vector<1x1x32x8xf32>
    tpu.vector_store %arg4[%c0_5, %c0_6, %c0_7, %c0_8], %24 {strides = array<i32>} : memref<1x2x32x8xf32, #tpu.memory_space<vmem>>, vector<1x1x32x8xf32>,
    %c2_i32_9 = arith.constant 2 : i32
    %25 = arith.muli %arg0, %c2_i32_9 : i32
    %c1_i32 = arith.constant 1 : i32
    %26 = arith.addi %25, %c1_i32 : i32
    %27 = arith.index_cast %26 : i32 to index
    %28 = memref.load %arg1[%27] : memref<4xi32, #tpu.memory_space<smem>>
    %c0_i32_10 = arith.constant 0 : i32
    %c8_i32_11 = arith.constant 8 : i32
    %29 = arith.maxsi %c0_i32_10, %28 : i32
    %30 = arith.minsi %c8_i32_11, %29 : i32
    %31 = arith.index_cast %26 : i32 to index
    %32 = memref.load %arg2[%31] : memref<4xi32, #tpu.memory_space<smem>>
    %c0_i32_12 = arith.constant 0 : i32
    %c8_i32_13 = arith.constant 8 : i32
    %33 = arith.maxsi %c0_i32_12, %32 : i32
    %34 = arith.minsi %c8_i32_13, %33 : i32
    %c0_14 = arith.constant 0 : index
    %c0_15 = arith.constant 0 : index
    %35 = arith.index_cast %30 : i32 to index
    %c0_16 = arith.constant 0 : index
    %36 = vector.load %arg3[%c0_14, %c0_15, %35, %c0_16] : memref<1x4x16x16xf32, #tpu.memory_space<vmem>>, vector<1x4x8x16xf32>
    %37 = vector.shape_cast %36 : vector<1x4x8x16xf32> to vector<4x8x16xf32>
    %38 = vector.broadcast %34 : i32 to vector<16x8xi32>
    %39 = arith.addi %1, %38 : vector<16x8xi32>
    %40 = arith.cmpi eq, %0, %39 : vector<16x8xi32>
    %41 = arith.extui %40 : vector<16x8xi1> to vector<16x8xi32>
    %42 = arith.sitofp %41 : vector<16x8xi32> to vector<16x8xf32>
    %43 = vector.shape_cast %37 : vector<4x8x16xf32> to vector<32x16xf32>
    %cst_17 = arith.constant dense<0.000000e+00> : vector<32x8xf32>
    %44 = tpu.matmul %43, %42, %cst_17 {dimension_numbers = #tpu.dot_dimension_numbers<[1], [0], [0], [1], [0, 0, 1, 1], [], []>} : vector<32x16xf32>, vector<16x8xf32>, vector<32x8xf32> -> vector<32x8xf32>
    %c0_18 = arith.constant 0 : index
    %c1 = arith.constant 1 : index
    %c0_19 = arith.constant 0 : index
    %c0_20 = arith.constant 0 : index
    %45 = vector.load %arg4[%c0_18, %c1, %c0_19, %c0_20] : memref<1x2x32x8xf32, #tpu.memory_space<vmem>>, vector<1x1x32x8xf32>
    %46 = vector.shape_cast %45 : vector<1x1x32x8xf32> to vector<32x8xf32>
    %47 = vector.shape_cast %44 : vector<32x8xf32> to vector<1x1x32x8xf32>
    tpu.vector_store %arg4[%c0_18, %c1, %c0_19, %c0_20], %47 {strides = array<i32>} : memref<1x2x32x8xf32, #tpu.memory_space<vmem>>, vector<1x1x32x8xf32>,
    return
  }
  func.func @transform_0(%arg0: i32, %arg1: memref<4xi32, #tpu.memory_space<smem>>, %arg2: memref<4xi32, #tpu.memory_space<smem>>) -> (i32, i32, i32, i32) {
    %c0_i32 = arith.constant 0 : i32
    %c0_i32_0 = arith.constant 0 : i32
    %c0_i32_1 = arith.constant 0 : i32
    %c0_i32_2 = arith.constant 0 : i32
    return %arg0, %c0_i32, %c0_i32_0, %c0_i32_1 : i32, i32, i32, i32
  }
  func.func @transform_1(%arg0: i32, %arg1: memref<4xi32, #tpu.memory_space<smem>>, %arg2: memref<4xi32, #tpu.memory_space<smem>>) -> (i32, i32, i32, i32) {
    %c0_i32 = arith.constant 0 : i32
    %c0_i32_0 = arith.constant 0 : i32
    %c0_i32_1 = arith.constant 0 : i32
    %c0_i32_2 = arith.constant 0 : i32
    return %arg0, %c0_i32, %c0_i32_0, %c0_i32_1 : i32, i32, i32, i32
  }
}

</mosaic_0001>

<llo_original>
// kernel: tpu_custom_call.1
$region0: #{tpu_custom_call.1}
  #allocation0 [shape = 'u32[]', space=smem, size = 0x4, offset = 0x4, fixed_abs, tag = 'smem constant byte address 0x4 - core index']
  #allocation1 [shape = 'u32[144,128]{1,0:T(1,128)}', space=vmem, size = 0x12000, scoped, tag = 'internal scratch']
  #allocation2 [shape = 's32[1]{0}', space=sflag, size = 0x4, scoped, tag = 'scoped memory for tpu_custom_call.1']
  #allocation3 [shape = 'u8[512]{0}', space=smem, size = 0x200, scoped, tag = 'prefetched SMEM operand 0']
  #allocation4 [shape = 'u8[512]{0}', space=smem, size = 0x200, scoped, tag = 'prefetched SMEM operand 1']
  %s0 = inlined_call_operand.hbm [shape: s32[4], index: 0, kind: input, shape index: {}]
  %s1 = inlined_call_operand.vmem [shape: s32[4], index: 1, kind: input, shape index: {}]
  %s2 = inlined_call_operand.hbm [shape: f32[2,4,16,16], index: 2, kind: input, shape index: {}]
  %s3 = inlined_call_operand.vmem [shape: f32[2,2,32,8], index: 3, kind: output, shape index: {}]
  %s4 = sld [smem:[#allocation0]]
  $region41: #{tpu_custom_call.1} parent=0
    _
  %s6 = ssub.s32 1, %s4
  %s7 = scalar_select 0, %s6, %s4
  %9 = dma.hbm_to_smem %s0, 16, [#allocation3], [#allocation2]
  %s10 = sshll.u32 %s1, 4
  %s11 = int_to_ptr.vmem [resolvable:$true] %s10
  %13 = dma.vmem_to_smem %s11, 16, [#allocation4], [#allocation2]
  %14 = dma.done [#allocation2], 32
  %15 = sfence
  $region1: #{tpu_custom_call.1} parent=0
    #allocation5 [shape = 'u8[65536]{0}', space=vmem, size = 0x10000, scoped, tag = 'input window, operand 2']
    #allocation6 [shape = 's32[2]{0}', space=sflag, size = 0x8, scoped, tag = 'scoped memory for tpu_custom_call.1']
    %16 = vsyncpa [#allocation6], 0
    %s17 = scalar_lea.sflag [#allocation6], 1
    %18 = vsyncpa %s17, 0
    loop: start=0, step=1, limit=4
    $region2: #{tpu_custom_call.1} parent=1 // loop_pre_header
      _
    $region3: #{tpu_custom_call.1} parent=1 // loop_header
      %s20 = sphi 0, %s24
      %p21 = scmp.ge.s32.totalorder %s20, 4
      %s30 = sphi 0, %s32
      %s33 = sphi 0, %s30
      %s34 = sphi 0, %s33
      %s50 = sphi 0, %s34
      %s56 = sphi 0, %s58
      %s59 = sphi 0, %s56
      %s60 = sphi 0, %s59
      %s76 = sphi 0, %s60
    $region4: #{tpu_custom_call.1} parent=1 // loop_header_branch
      %23 = sbr.rel (%p21) target = $region8
    $region5: #{tpu_custom_call.1} parent=1 // loop_body
      %s25 = ssub.s32 %s20, 1
      %s26 = ssub.s32 %s20, 2
      %s27 = sadd.s32 %s20, 1
      %s28 = ssub.s32 %s20, %s27
      %p29 = scmp.eq.s32.totalorder %s28, 0
      %s31 = sadd.s32 %s30, 1
      %s32 = scalar_select %p29, %s30, %s31
      %p35 = pneg %p29
      %p36 = scmp.eq.s32.totalorder %s20, 1
      %p37 = por %p35, %p36
      %p38 = scmp.ne.s32.totalorder %s30, %s33
      %p39 = scmp.eq.s32.totalorder %s20, 0
      %p40 = por %p38, %p39
      %p41 = scmp.ne.s32.totalorder %s30, %s33
      %p42 = scmp.eq.s32.totalorder %s25, 1
      %p43 = por %p41, %p42
      %p44 = scmp.ne.s32.totalorder %s33, %s34
      %p45 = scmp.eq.s32.totalorder %s25, 0
      %p46 = por %p44, %p45
      %p47 = scmp.ne.s32.totalorder %s33, %s34
      %p48 = scmp.eq.s32.totalorder %s26, 1
      %p49 = por %p47, %p48
      %p51 = scmp.ne.s32.totalorder %s34, %s50
      %p52 = scmp.eq.s32.totalorder %s26, 0
      %p53 = por %p51, %p52
      %s54 = ssub.s32 %s20, %s27
      %p55 = scmp.eq.s32.totalorder %s54, 0
      %s57 = sadd.s32 %s56, 1
      %s58 = scalar_select %p55, %s56, %s57
      %p61 = pneg %p55
      %p62 = scmp.eq.s32.totalorder %s20, 1
      %p63 = por %p61, %p62
      %p64 = scmp.ne.s32.totalorder %s56, %s59
      %p65 = scmp.eq.s32.totalorder %s20, 0
      %p66 = por %p64, %p65
      %p67 = scmp.ne.s32.totalorder %s56, %s59
      %p68 = scmp.eq.s32.totalorder %s25, 1
      %p69 = por %p67, %p68
      %p70 = scmp.ne.s32.totalorder %s59, %s60
      %p71 = scmp.eq.s32.totalorder %s25, 0
      %p72 = por %p70, %p71
      %p73 = scmp.ne.s32.totalorder %s59, %s60
      %p74 = scmp.eq.s32.totalorder %s26, 1
      %p75 = por %p73, %p74
      %p77 = scmp.ne.s32.totalorder %s60, %s76
      %p78 = scmp.eq.s32.totalorder %s26, 0
      %p79 = por %p77, %p78
      %p80 = scmp.le.s32.totalorder 1, %s20
      %p81 = scmp.lt.s32.totalorder %s20, 3
      %p82 = pnand %p80, %p81
      %p83 = pneg %p82
      // Predicated region
      $region9: #{tpu_custom_call.1} parent=5 // pred_check
        _
      $region10: #{tpu_custom_call.1} parent=5 // pred_check_branch
        %85 = sbr.rel (%p82) target = $region12
      $region11: #{tpu_custom_call.1} parent=5 // pred_region
        %s86 = ssub.s32 %s20, 1
      $region12: #{tpu_custom_call.1} parent=5 // pred_fallthru
        _
      %p87 = scmp.lt.s32.totalorder %s20, 2
      // Predicated region
      $region13: #{tpu_custom_call.1} parent=5 // pred_check
        %p88 = pneg %p87
      $region14: #{tpu_custom_call.1} parent=5 // pred_check_branch
        %90 = sbr.rel (%p88) target = $region16
      $region15: #{tpu_custom_call.1} parent=5 // pred_region
        // Predicated region
        $region17: #{tpu_custom_call.1} parent=15 // pred_check
          %p91 = pneg %p40
        $region18: #{tpu_custom_call.1} parent=15 // pred_check_branch
          %93 = sbr.rel (%p91) target = $region20
        $region19: #{tpu_custom_call.1} parent=15 // pred_region
          %s94 = sand.u32 %s30, 1
          %s95 = scalar_lea.sflag [#allocation6], %s94
          %s96 = sand.u32 %s30, 1
          %s97 = smul.addr %s96, 64
          %s98 = scalar_lea.vmem [#allocation5], %s97
          %s100 = ssub.s32 1024, 1024
          %101 = vsyncadd %s95, %s100
          %s102 = smul.addr %s20, 8
          %s103 = smul.addr %s102, 128
          %s104 = scalar_lea.hbm %s2, %s103
          %s105 = sshll.u32 %s98, 4
          %s106 = int_to_ptr.vmem [resolvable:$true] %s105
          %111 = dma.hbm_to_vmem [thread:$0]  %s104, 1024, %s106, %s95, 128, 128, 8
        $region20: #{tpu_custom_call.1} parent=15 // pred_fallthru
          _
      $region16: #{tpu_custom_call.1} parent=5 // pred_fallthru
        _
      %p112 = scmp.le.s32.totalorder 1, %s20
      %p113 = scmp.lt.s32.totalorder %s20, 3
      %p114 = pnand %p112, %p113
      %p115 = pneg %p114
      // Predicated region
      $region21: #{tpu_custom_call.1} parent=5 // pred_check
        _
      $region22: #{tpu_custom_call.1} parent=5 // pred_check_branch
        %117 = sbr.rel (%p114) target = $region24
      $region23: #{tpu_custom_call.1} parent=5 // pred_region
        %s118 = ssub.s32 %s20, 1
        %s119 = sand.u32 %s33, 1
        %s120 = scalar_lea.sflag [#allocation6], %s119
        %s121 = sand.u32 %s33, 1
        %s122 = smul.addr %s121, 64
        %s123 = scalar_lea.vmem [#allocation5], %s122
        // Predicated region
        $region25: #{tpu_custom_call.1} parent=23 // pred_check
          %p124 = pneg %p46
        $region26: #{tpu_custom_call.1} parent=23 // pred_check_branch
          %126 = sbr.rel (%p124) target = $region28
        $region27: #{tpu_custom_call.1} parent=23 // pred_region
          %127 = dma.done %s120, 1024
        $region28: #{tpu_custom_call.1} parent=23 // pred_fallthru
          _
        %s128 = sand.u32 %s33, 1
        %s129 = scalar_lea.sflag [#allocation6], %s128
        %s130 = sand.u32 %s33, 1
        %s131 = smul.addr %s130, 64
        %s132 = scalar_lea.vmem [#allocation5], %s131
        %p133 = pneg %p46
        %p134 = pneg %p43
        %p135 = pneg %p72
        %p136 = pneg %p69
        %p137 = scmp.lt.s32.totalorder %s25, 1
        %s138 = scalar_select %p137, %s25, 1
        %s139 = smul.addr %s138, 8
        %s140 = smul.addr %s139, 8
        %s141 = scalar_lea.vmem %s3, %s140
        %p142 = scmp.lt.s32.totalorder %s25, 1
        %s143 = scalar_select %p142, %s25, 1
        %s144 = smul.addr %s143, 8
        %s145 = smul.addr %s144, 8
        %s146 = scalar_lea.vmem %s3, %s145
        %v147 = vlaneseq
        %v148 = vshrl.u32 %v147, 7
        %v149 = vadd.s32 %v148, 8
        %v150 = vlaneseq
        %v151 = vand.u32 %v150, 127
        %s152 = smul.u32 %s25, 2
        %s153 = sld [smem:[#allocation3 + %s152]]
        %p154 = scmp.gt.s32.totalorder %s153, 0
        %s155 = scalar_select %p154, %s153, 0
        %p156 = scmp.lt.s32.totalorder %s155, 8
        %s157 = scalar_select %p156, %s155, 8
        %s158 = sld [smem:[#allocation4 + %s152]]
        %p159 = scmp.gt.s32.totalorder %s158, 0
        %s160 = scalar_select %p159, %s158, 0
        %p161 = scmp.lt.s32.totalorder %s160, 8
        %s162 = scalar_select %p161, %s160, 8
        %s163 = scalar_lea.vmem %s123, %s157 [#allocation5]
        %v164 = vld [vmem:[%s163] sm:$0xff]
        %v165 = vld [vmem:[%s163 + $0x10] sm:$0xff]
        %v166 = vld [vmem:[%s163 + $0x20] sm:$0xff]
        %v167 = vld [vmem:[%s163 + $0x30] sm:$0xff]
        %v168 = vstv %s162
        %v169 = vadd.s32 %v151, %v168
        %vm170 = vcmp.eq.s32.totalorder %v148, %v169
        %vm171 = vcmp.eq.s32.totalorder %v149, %v169
        %v172 = vsel %vm170, 1, 0
        %v173 = vsel %vm171, 1, 0
        %v174 = vcvt.s32.f32 %v172
        %v175 = vcvt.s32.f32 %v173
        %vm176 = vcmask 130048
        %v178 = vsel %vm176, %v164, 0
        %v181 = vsel %vm176, %v165, 0
        %v184 = vsel %vm176, %v166, 0
        %v187 = vsel %vm176, %v167, 0
        %189 = vmatprep.subr.mxu0 0.0
        %190 = vmatpush1.msra.mxu0 %v174
        %191 = vmatprep.subr.mxu0 0.0
        %192 = vmatpush1.msra.mxu0 %v175
        %193 = vmatprep.subr.mxu0 0.0
        %194 = vmatpush1.msra.mxu0 0.0
        %195 = vmatprep.subr.mxu0 0.0
        %196 = vmatpush1.msra.mxu0 0.0
        %197 = vmatprep.subr.mxu0 0.0
        %198 = vmatpush1.msra.mxu0 0.0
        %199 = vmatprep.subr.mxu0 0.0
        %200 = vmatpush1.msra.mxu0 0.0
        %201 = vmatprep.subr.mxu0 0.0
        %202 = vmatpush1.msra.mxu0 0.0
        %203 = vmatprep.subr.mxu0 0.0
        %204 = vmatpush1.msra.mxu0 0.0
        %205 = vmatprep.subr.mxu0 0.0
        %206 = vmatpush1.msra.mxu0 0.0
        %207 = vmatprep.subr.mxu0 0.0
        %208 = vmatpush1.msra.mxu0 0.0
        %209 = vmatprep.subr.mxu0 0.0
        %210 = vmatpush1.msra.mxu0 0.0
        %211 = vmatprep.subr.mxu0 0.0
        %212 = vmatpush1.msra.mxu0 0.0
        %213 = vmatprep.subr.mxu0 0.0
        %214 = vmatpush1.msra.mxu0 0.0
        %215 = vmatprep.subr.mxu0 0.0
        %216 = vmatpush1.msra.mxu0 0.0
        %217 = vmatprep.subr.mxu0 0.0
        %218 = vmatpush1.msra.mxu0 0.0
        %219 = vmatprep.subr.mxu0 0.0
        %220 = vmatpush1.msra.mxu0 0.0
        %221 = vmatprep.subr.mxu0 0.0
        %222 = vmatpush1.msra.mxu0 0.0
        %223 = vmatprep.subr.mxu0 0.0
        %224 = vmatpush1.msra.mxu0 0.0
        %225 = vmatprep.subr.mxu0 0.0
        %226 = vmatpush1.msra.mxu0 0.0
        %227 = vmatprep.subr.mxu0 0.0
        %228 = vmatpush1.msra.mxu0 0.0
        %229 = vmatprep.subr.mxu0 0.0
        %230 = vmatpush1.msra.mxu0 0.0
        %231 = vmatprep.subr.mxu0 0.0
        %232 = vmatpush1.msra.mxu0 0.0
        %233 = vmatprep.subr.mxu0 0.0
        %234 = vmatpush1.msra.mxu0 0.0
        %235 = vmatprep.subr.mxu0 0.0
        %236 = vmatpush1.msra.mxu0 0.0
        %237 = vmatprep.subr.mxu0 0.0
        %238 = vmatpush1.msra.mxu0 0.0
        %239 = vmatprep.subr.mxu0 0.0
        %240 = vmatpush1.msra.mxu0 0.0
        %241 = vmatprep.subr.mxu0 0.0
        %242 = vmatpush1.msra.mxu0 0.0
        %243 = vmatprep.subr.mxu0 0.0
        %244 = vmatpush1.msra.mxu0 0.0
        %245 = vmatprep.subr.mxu0 0.0
        %246 = vmatpush1.msra.mxu0 0.0
        %247 = vmatprep.subr.mxu0 0.0
        %248 = vmatpush1.msra.mxu0 0.0
        %249 = vmatprep.subr.mxu0 0.0
        %250 = vmatpush1.msra.mxu0 0.0
        %251 = vmatprep.subr.mxu0 0.0
        %252 = vmatpush1.msra.mxu0 0.0
        %253 = vmatprep.mubr.f32.mxu0 0.0
        %254 = vmatmul.mubr.f32.gmra.mrb[0].mxu0 %v178
        %v255 = vpop.f32.mrb[0].mxu0
        %v256 = vadd.f32 0.0, %v255
        %v257 = vpop.f32.mrb[0].mxu0
        %258 = vmatprep.mubr.f32.mxu0 0.0
        %259 = vmatmul.mubr.f32.gmra.mrb[0].mxu0 %v181
        %v260 = vpop.f32.mrb[0].mxu0
        %v261 = vadd.f32 0.0, %v260
        %v262 = vpop.f32.mrb[0].mxu0
        %263 = vmatprep.mubr.f32.mxu0 0.0
        %264 = vmatmul.mubr.f32.gmra.mrb[0].mxu0 %v184
        %v265 = vpop.f32.mrb[0].mxu0
        %v266 = vadd.f32 0.0, %v265
        %v267 = vpop.f32.mrb[0].mxu0
        %268 = vmatprep.mubr.f32.mxu0 0.0
        %269 = vmatmul.mubr.f32.gmra.mrb[0].mxu0 %v187
        %v270 = vpop.f32.mrb[0].mxu0
        %v271 = vadd.f32 0.0, %v270
        %v272 = vpop.f32.mrb[0].mxu0
        %273 = vdwg.mxu0
        %vm274 = vcmask 64512
        %275 = vst.msk [vmem:[%s146] sm:$0xff] %vm274, %v256
        %276 = vst.msk [vmem:[%s146 + $0x8] sm:$0xff] %vm274, %v261
        %277 = vst.msk [vmem:[%s146 + $0x10] sm:$0xff] %vm274, %v266
        %278 = vst.msk [vmem:[%s146 + $0x18] sm:$0xff] %vm274, %v271
        %s279 = sadd.s32 %s152, 1
        %s280 = sld [smem:[#allocation3 + %s279]]
        %p281 = scmp.gt.s32.totalorder %s280, 0
        %s282 = scalar_select %p281, %s280, 0
        %p283 = scmp.lt.s32.totalorder %s282, 8
        %s284 = scalar_select %p283, %s282, 8
        %s285 = sld [smem:[#allocation4 + %s279]]
        %p286 = scmp.gt.s32.totalorder %s285, 0
        %s287 = scalar_select %p286, %s285, 0
        %p288 = scmp.lt.s32.totalorder %s287, 8
        %s289 = scalar_select %p288, %s287, 8
        %s290 = scalar_lea.vmem %s123, %s284 [#allocation5]
        %v291 = vld [vmem:[%s290] sm:$0xff]
        %v292 = vld [vmem:[%s290 + $0x10] sm:$0xff]
        %v293 = vld [vmem:[%s290 + $0x20] sm:$0xff]
        %v294 = vld [vmem:[%s290 + $0x30] sm:$0xff]
        %v295 = vstv %s289
        %v296 = vadd.s32 %v151, %v295
        %vm297 = vcmp.eq.s32.totalorder %v148, %v296
        %vm298 = vcmp.eq.s32.totalorder %v149, %v296
        %v299 = vsel %vm297, 1, 0
        %v300 = vsel %vm298, 1, 0
        %v301 = vcvt.s32.f32 %v299
        %v302 = vcvt.s32.f32 %v300
        %v304 = vsel %vm176, %v291, 0
        %v307 = vsel %vm176, %v292, 0
        %v310 = vsel %vm176, %v293, 0
        %v313 = vsel %vm176, %v294, 0
        %315 = vmatprep.subr.mxu0 0.0
        %316 = vmatpush1.msra.mxu0 %v301
        %317 = vmatprep.subr.mxu0 0.0
        %318 = vmatpush1.msra.mxu0 %v302
        %319 = vmatprep.subr.mxu0 0.0
        %320 = vmatpush1.msra.mxu0 0.0
        %321 = vmatprep.subr.mxu0 0.0
        %322 = vmatpush1.msra.mxu0 0.0
        %323 = vmatprep.subr.mxu0 0.0
        %324 = vmatpush1.msra.mxu0 0.0
        %325 = vmatprep.subr.mxu0 0.0
        %326 = vmatpush1.msra.mxu0 0.0
        %327 = vmatprep.subr.mxu0 0.0
        %328 = vmatpush1.msra.mxu0 0.0
        %329 = vmatprep.subr.mxu0 0.0
        %330 = vmatpush1.msra.mxu0 0.0
        %331 = vmatprep.subr.mxu0 0.0
        %332 = vmatpush1.msra.mxu0 0.0
        %333 = vmatprep.subr.mxu0 0.0
        %334 = vmatpush1.msra.mxu0 0.0
        %335 = vmatprep.subr.mxu0 0.0
        %336 = vmatpush1.msra.mxu0 0.0
        %337 = vmatprep.subr.mxu0 0.0
        %338 = vmatpush1.msra.mxu0 0.0
        %339 = vmatprep.subr.mxu0 0.0
        %340 = vmatpush1.msra.mxu0 0.0
        %341 = vmatprep.subr.mxu0 0.0
        %342 = vmatpush1.msra.mxu0 0.0
        %343 = vmatprep.subr.mxu0 0.0
        %344 = vmatpush1.msra.mxu0 0.0
        %345 = vmatprep.subr.mxu0 0.0
        %346 = vmatpush1.msra.mxu0 0.0
        %347 = vmatprep.subr.mxu0 0.0
        %348 = vmatpush1.msra.mxu0 0.0
        %349 = vmatprep.subr.mxu0 0.0
        %350 = vmatpush1.msra.mxu0 0.0
        %351 = vmatprep.subr.mxu0 0.0
        %352 = vmatpush1.msra.mxu0 0.0
        %353 = vmatprep.subr.mxu0 0.0
        %354 = vmatpush1.msra.mxu0 0.0
        %355 = vmatprep.subr.mxu0 0.0
        %356 = vmatpush1.msra.mxu0 0.0
        %357 = vmatprep.subr.mxu0 0.0
        %358 = vmatpush1.msra.mxu0 0.0
        %359 = vmatprep.subr.mxu0 0.0
        %360 = vmatpush1.msra.mxu0 0.0
        %361 = vmatprep.subr.mxu0 0.0
        %362 = vmatpush1.msra.mxu0 0.0
        %363 = vmatprep.subr.mxu0 0.0
        %364 = vmatpush1.msra.mxu0 0.0
        %365 = vmatprep.subr.mxu0 0.0
        %366 = vmatpush1.msra.mxu0 0.0
        %367 = vmatprep.subr.mxu0 0.0
        %368 = vmatpush1.msra.mxu0 0.0
        %369 = vmatprep.subr.mxu0 0.0
        %370 = vmatpush1.msra.mxu0 0.0
        %371 = vmatprep.subr.mxu0 0.0
        %372 = vmatpush1.msra.mxu0 0.0
        %373 = vmatprep.subr.mxu0 0.0
        %374 = vmatpush1.msra.mxu0 0.0
        %375 = vmatprep.subr.mxu0 0.0
        %376 = vmatpush1.msra.mxu0 0.0
        %377 = vmatprep.subr.mxu0 0.0
        %378 = vmatpush1.msra.mxu0 0.0
        %379 = vmatprep.mubr.f32.mxu0 0.0
        %380 = vmatmul.mubr.f32.gmra.mrb[0].mxu0 %v304
        %v381 = vpop.f32.mrb[0].mxu0
        %v382 = vadd.f32 0.0, %v381
        %v383 = vpop.f32.mrb[0].mxu0
        %384 = vmatprep.mubr.f32.mxu0 0.0
        %385 = vmatmul.mubr.f32.gmra.mrb[0].mxu0 %v307
        %v386 = vpop.f32.mrb[0].mxu0
        %v387 = vadd.f32 0.0, %v386
        %v388 = vpop.f32.mrb[0].mxu0
        %389 = vmatprep.mubr.f32.mxu0 0.0
        %390 = vmatmul.mubr.f32.gmra.mrb[0].mxu0 %v310
        %v391 = vpop.f32.mrb[0].mxu0
        %v392 = vadd.f32 0.0, %v391
        %v393 = vpop.f32.mrb[0].mxu0
        %394 = vmatprep.mubr.f32.mxu0 0.0
        %395 = vmatmul.mubr.f32.gmra.mrb[0].mxu0 %v313
        %v396 = vpop.f32.mrb[0].mxu0
        %v397 = vadd.f32 0.0, %v396
        %v398 = vpop.f32.mrb[0].mxu0
        %399 = vdwg.mxu0
        %s400 = scalar_lea.vmem %s146, 32
        %401 = vst.msk [vmem:[%s400] sm:$0xff] %vm274, %v382
        %402 = vst.msk [vmem:[%s400 + $0x8] sm:$0xff] %vm274, %v387
        %403 = vst.msk [vmem:[%s400 + $0x10] sm:$0xff] %vm274, %v392
        %404 = vst.msk [vmem:[%s400 + $0x18] sm:$0xff] %vm274, %v397
        %p405 = scmp.lt.s32.totalorder %s25, 1
        %s406 = scalar_select %p405, %s25, 1
        %s407 = smul.addr %s406, 8
        %s408 = smul.addr %s407, 8
        %s409 = scalar_lea.vmem %s3, %s408
        // Predicated region
        $region29: #{tpu_custom_call.1} parent=23 // pred_check
          %p410 = pneg %p69
        $region30: #{tpu_custom_call.1} parent=23 // pred_check_branch
          %412 = sbr.rel (%p410) target = $region32
        $region31: #{tpu_custom_call.1} parent=23 // pred_region
          _
        $region32: #{tpu_custom_call.1} parent=23 // pred_fallthru
          _
      $region24: #{tpu_custom_call.1} parent=5 // pred_fallthru
        _
      %p413 = scmp.le.s32.totalorder 2, %s20
      // Predicated region
      $region33: #{tpu_custom_call.1} parent=5 // pred_check
        %p414 = pneg %p413
      $region34: #{tpu_custom_call.1} parent=5 // pred_check_branch
        %416 = sbr.rel (%p414) target = $region36
      $region35: #{tpu_custom_call.1} parent=5 // pred_region
        %s417 = ssub.s32 %s20, 2
        // Predicated region
        $region37: #{tpu_custom_call.1} parent=35 // pred_check
          %p418 = pneg %p75
        $region38: #{tpu_custom_call.1} parent=35 // pred_check_branch
          %420 = sbr.rel (%p418) target = $region40
        $region39: #{tpu_custom_call.1} parent=35 // pred_region
          %p421 = scmp.lt.s32.totalorder %s26, 1
          %s422 = scalar_select %p421, %s26, 1
          %s423 = smul.addr %s422, 8
          %s424 = smul.addr %s423, 8
          %s425 = scalar_lea.vmem %s3, %s424
        $region40: #{tpu_custom_call.1} parent=35 // pred_fallthru
          _
      $region36: #{tpu_custom_call.1} parent=5 // pred_fallthru
        _
    $region6: #{tpu_custom_call.1} parent=1 // loop_footer
      %s24 = sadd.s32 1, %s20
    $region7: #{tpu_custom_call.1} parent=1 // loop_footer_branch
      %19 = sbr.rel target = $region3
    $region8: #{tpu_custom_call.1} parent=1 // loop_exit
      _
    %426 = vsyncpa [#allocation6], 1
    %s427 = scalar_lea.sflag [#allocation6], 1
    %428 = vsyncpa %s427, 1

</llo_original>
